<compile_context>
chip_gen: v6e
topology: v6e:2x2x1
jax: 0.10.0
libtpu: 0.0.40
codegen_flags: <defaults>
</compile_context>

<pallas_src>
import functools
import math

import jax
import jax.numpy as jnp
from jax.experimental import pallas as pl
from jax.experimental.pallas import tpu as pltpu


# ---------------------------------------------------------------------------
# Kernel 1: the STS prior (data independent), column-tiled over the last axis
# ---------------------------------------------------------------------------
def _sts_kernel(mat_ref, sigma_ref, alpha_ref, prior_ref):
    """mat_ref   : (G, N, CT)  column tile of the graph matrices
       sigma_ref : (G, 1, CT)  column tile of sigma.weight.reshape(G, 1, N)
       alpha_ref : (G, 1, 1)   softmax(alpha)  (precomputed in the wrapper)
       prior_ref : (N, CT)     column tile of the combined prior (output)
    """
    g, n, ct = mat_ref.shape
    j = pl.program_id(0)

    mats = mat_ref[...]                                     # (G, N, CT)
    sig_w = sigma_ref[...]                                  # (G, 1, CT)

    # sigma = sigmoid(5 w) + 1e-5 ; sigma = 3 ** sigma - 1        (per-column vectors)
    s = 1.0 / (1.0 + jnp.exp(-5.0 * sig_w)) + 1e-5
    s = jnp.exp(s * math.log(3.0)) - 1.0                    # (G, 1, CT)

    # reciprocals on the small (G,1,CT) vectors; only multiplies on the big tensor
    inv_2s2 = -0.5 / (s * s)                                # == -1 / (2 sigma^2)
    inv_nrm = 1.0 / (math.sqrt(2.0 * math.pi) * s)
    pr = jnp.exp(mats * inv_2s2) * inv_nrm                  # 1 EUP pass + 2 VPU muls

    # generate_mask(): zero where matrices == 0, diagonal excluded (global column ids)
    row = jax.lax.broadcasted_iota(jnp.int32, (n, ct), 0)
    col = jax.lax.broadcasted_iota(jnp.int32, (n, ct), 1) + j * ct
    pr = jnp.where((mats == 0.0) & (row != col)[None, :, :], 0.0, pr)

    # normalize over dim 1 (rows) -- fully contained in the column tile
    inv_den = 1.0 / (jnp.sum(pr, axis=1, keepdims=True) + 1e-8)   # (G, 1, CT)
    pr = pr * inv_den

    # alpha-weighted sum over the graph axis (softmax already applied in wrapper)
    prior_ref[...] = jnp.sum(pr * alpha_ref[...], axis=0)   # (N, CT)


# ---------------------------------------------------------------------------
# Kernel 2: the GCN layer stack (batch blocked into the grid, nodes in lanes)
# ---------------------------------------------------------------------------
def _gcn_kernel(prior_t_ref, x_ref, *rest, matmul_dtype):
    """prior_t_ref : (N, N)          transposed prior P^T (resident across steps)
       x_ref       : (B_blk, D, N)   batch block: features in sublanes, nodes in lanes
       rest        : n_layers torch-layout (out, in) weights, then out_ref (B_blk, Dout, N)
    """
    w_refs, out_ref = rest[:-1], rest[-1]
    b_blk, d0, n = x_ref.shape

    prior_t = prior_t_ref[...].astype(matmul_dtype)          # hoisted; no-op cast in f32
    h = x_ref[...]                                            # (B_blk, d, N)

    for w_ref in w_refs:                                      # static layer unroll
        d_out, d_k = w_ref.shape                              # torch layout (out, in)
        # ---- graph mixing: ONE 2-D MXU matmul, prior pushed once per layer ------
        # rows = fused (batch, feature) index; leading-dim collapse is a free view
        # because d_k is padded to a multiple of 8 in the wrapper.
        h2 = h.reshape(b_blk * d_k, n)
        wx = jnp.dot(h2.astype(matmul_dtype), prior_t,
                     preferred_element_type=jnp.float32)      # (B_blk*d_k, N)
        wx3 = wx.reshape(b_blk, d_k, n)                       # free leading-dim split
        # ---- Linear(bias=False): canonical batched MXU matmul over the block ----
        w_b = jnp.broadcast_to(w_ref[...].astype(matmul_dtype)[None],
                               (b_blk, d_out, d_k))           # tiny (D,D) weight bcast
        y = jnp.einsum('bok,bkn->bon', w_b, wx3.astype(matmul_dtype),
                       preferred_element_type=jnp.float32)    # (B_blk, d_out, N)
        h = jnp.maximum(y, 0.0)                               # ReLU on the VPU

    # TODO(synk): for tiny N (<128) this store is a masked vst; if the trace shows the
    # store path exposed, pack the output as (B_blk, d_out*N) and reshape in the wrapper.
    out_ref[...] = h.astype(out_ref.dtype)


# ---------------------------------------------------------------------------
# Heuristics / budgets
# ---------------------------------------------------------------------------
def _tc_count():
    """2 on v7x-class chips (2 TensorCores/chip) so the 'parallel' batch axis can
    shard; 1 on v5e/v6e (maximize the block instead)."""
    try:
        if "v7" in jax.devices()[0].device_kind.lower():
            return 2
    except Exception:
        pass
    return 1


def _gcn_step_bytes(b_blk, n, d_in, d_out):
    io = 2 * b_blk * n * (d_in + d_out) * 4                  # double-buffered x / out blocks
    resident = 2 * n * n * 4                                 # prior^T block
    live = 4 * b_blk * n * max(d_in, d_out) * 4              # h / wx / y f32 intermediates
    live += b_blk * d_in * d_out * 4                         # broadcast weight
    return io + resident + live


def _pick_b_block(batch, n, d_in, d_out, *, min_steps=1, vmem_budget=24 << 20):
    """Largest divisor of `batch` that fits the per-step VMEM budget, while leaving
    >= min_steps grid steps when possible (v7x megacore). Per-step overhead ~0.35us,
    so bigger blocks amortize it on 1-TC chips."""
    cands = [b for b in range(1, batch + 1) if batch % b == 0]
    fit = [b for b in cands if _gcn_step_bytes(b, n, d_in, d_out) <= vmem_budget] or [1]
    stepped = [b for b in fit if batch // b >= min_steps] or fit
    return stepped[-1]


def _pick_col_tile(n, g, vmem_budget=24 << 20):
    """Column tile for the STS kernel: full N when N is not 128-aligned (block == array
    dim is always legal), otherwise the largest 128-multiple divisor that fits VMEM."""
    if n % 128 != 0:
        return n
    for ct in (c for c in (n, 2048, 1024, 512, 256, 128) if c <= n and n % c == 0):
        if 2 * (g * n * ct + n * ct + g * ct) * 4 <= vmem_budget:
            return ct
    return 128


def _pad_axis(a, axis, mult=8):
    pad = (-a.shape[axis]) % mult
    if pad == 0:
        return a
    widths = [(0, 0)] * a.ndim
    widths[axis] = (0, pad)
    return jnp.pad(a, widths)


# ---------------------------------------------------------------------------
# Wrapper
# ---------------------------------------------------------------------------
def multiple_gcn(x, matrices, sigma_w, alpha, lin_weights, *, use_bf16_matmul=False):
    """Pallas forward of MultipleGCN (bias=False, activation=relu).

    x           : (B, N, D) float32 node features (in_channels == out_channels == D)
    matrices    : (G, N, N) float32 graph matrices
    sigma_w     : (N, G)    float32 == nn.Linear(G, N).weight
    alpha       : (G,)      float32
    lin_weights : list of n_layers torch-layout (out, in) Linear weights
    use_bf16_matmul : cast MXU operands to bf16 (f32 accumulate); off by default so
                      the f32 parity check below stays at 1e-4.
    Returns (x_out, prior) exactly like the PyTorch module's forward.
    """
    B, N, D = x.shape
    G = matrices.shape[0]

    # ---- STS prior kernel: column-tiled, softmax(alpha) precomputed in XLA --------
    # NOTE: torch indexes self.sigma.weight (shape (N, G)) with a raw row-major
    # .reshape(G, 1, N); we replicate that exactly (not a transpose).
    sigma_r = sigma_w.reshape(G, 1, N)
    alpha_sm = jax.nn.softmax(alpha, axis=0).reshape(G, 1, 1)
    ct = _pick_col_tile(N, G)
    sts_bytes = 4 * (5 * G * N * ct + 2 * N * ct + 4 * G * ct)
    sts_vmem = int(min(max(2 * sts_bytes, 32 << 20), 48 << 20))   # v7x: 64 MiB physical

    prior = pl.pallas_call(
        _sts_kernel,
        out_shape=jax.ShapeDtypeStruct((N, N), jnp.float32),
        grid_spec=pltpu.PrefetchScalarGridSpec(
            num_scalar_prefetch=0,
            grid=(N // ct,),
            in_specs=[
                pl.BlockSpec((G, N, ct), lambda j: (0, 0, j)),
                pl.BlockSpec((G, 1, ct), lambda j: (0, 0, j)),
                pl.BlockSpec((G, 1, 1), lambda j: (0, 0, 0)),
            ],
            out_specs=pl.BlockSpec((N, ct), lambda j: (0, j)),
        ),
        compiler_params=pltpu.CompilerParams(
            dimension_semantics=("parallel",),      # column tiles are independent
            vmem_limit_bytes=sts_vmem),
    )(matrices, sigma_r, alpha_sm)

    # ---- GCN layer stack ------------------------------------------------------------
    mm_dtype = jnp.bfloat16 if use_bf16_matmul else jnp.float32

    # Pad channel dims to multiples of 8 so the in-kernel leading-dim collapse/split
    # are free sublane-aligned views; the zero rows/cols are inert through
    # mixing -> Linear -> ReLU and are sliced off at the end.
    wts = [_pad_axis(_pad_axis(w, 0), 1) for w in lin_weights]    # torch (out, in) layout
    if use_bf16_matmul:
        wts = [w.astype(jnp.bfloat16) for w in wts]
    d_out = lin_weights[-1].shape[0]
    d_out_p = wts[-1].shape[0]

    x_t = _pad_axis(jnp.transpose(x, (0, 2, 1)), 1)               # (B, D_p, N): nodes in lanes
    D_p = x_t.shape[1]
    prior_t = jnp.transpose(prior)                                # P^T -> canonical 2-D matmul

    b_blk = _pick_b_block(B, N, D_p, d_out_p, min_steps=_tc_count())
    gcn_bytes = _gcn_step_bytes(b_blk, N, D_p, d_out_p) + 2 * sum(int(w.size) for w in wts) * 4
    gcn_vmem = int(min(max(2 * gcn_bytes, 32 << 20), 48 << 20))   # explicit v7x-safe budget

    in_specs = [
        pl.BlockSpec((N, N), lambda b: (0, 0)),                   # prior^T resident across steps
        pl.BlockSpec((b_blk, D_p, N), lambda b: (b, 0, 0)),       # x batch block
    ]
    in_specs += [pl.BlockSpec(tuple(w.shape), lambda b: (0, 0)) for w in wts]

    out_t = pl.pallas_call(
        functools.partial(_gcn_kernel, matmul_dtype=mm_dtype),
        out_shape=jax.ShapeDtypeStruct((B, d_out_p, N), jnp.float32),
        grid_spec=pltpu.PrefetchScalarGridSpec(
            num_scalar_prefetch=0,
            grid=(B // b_blk,),
            in_specs=in_specs,
            out_specs=pl.BlockSpec((b_blk, d_out_p, N), lambda b: (b, 0, 0)),
        ),
        # "parallel": batch blocks shard across the two TensorCores on v7x
        # (the picker guarantees >= 2 steps there when the batch allows it).
        compiler_params=pltpu.CompilerParams(
            dimension_semantics=("parallel",),
            vmem_limit_bytes=gcn_vmem),
    )(prior_t, x_t, *wts)

    x_out = jnp.transpose(out_t, (0, 2, 1))[:, :, :d_out]         # back to (B, N, D), once
    return x_out, prior


# ---------------------------------------------------------------------------
# Pure-JAX reference replicating the PyTorch forward
# ---------------------------------------------------------------------------
def _reference(x, matrices, sigma_w, alpha, lin_weights):
    G, N, _ = matrices.shape
    sig = sigma_w.reshape(G, 1, N)
    sig = 1.0 / (1.0 + jnp.exp(-5.0 * sig)) + 1e-5
    sig = jnp.exp(sig * math.log(3.0)) - 1.0
    e = jnp.exp(-matrices / (2.0 * sig ** 2))
    pr = e / (math.sqrt(2.0 * math.pi) * sig)
    eye = jnp.eye(N, dtype=bool)
    pr = jnp.where((matrices == 0.0) & (~eye)[None], 0.0, pr)
    pr = pr / (pr.sum(axis=1, keepdims=True) + 1e-8)
    a = jax.nn.softmax(alpha, axis=0)
    prior = jnp.einsum('gnm,g->nm', pr, a)
    h = x
    for w in lin_weights:
        wx = jnp.einsum('nm,bmd->bnd', prior, h)
        h = jax.nn.relu(wx @ w.T)
    return h, prior


if __name__ == "__main__":
    # batch, nodes, channels (in_channels == out_channels, as the module's final
    # reshape(B, N, D) requires), graphs, layers.
    B, N, D, G = 2, 16, 32, 3
    n_layers = 2

    key = jax.random.PRNGKey(0)
    k_mat, k_sig, k_alpha, k_x, k_w0, k_w1 = jax.random.split(key, 6)

    raw = jax.random.uniform(k_mat, (G, N, N), dtype=jnp.float32)
    matrices = jnp.where(raw < 0.35, 0.0, raw)            # exact zeros -> mask path exercised

    sigma_w = (0.5 * jax.random.normal(k_sig, (N, G))).astype(jnp.float32)   # nn.Linear(G, N).weight
    alpha = (jnp.ones((G,), jnp.float32) / G
             + 0.1 * jax.random.normal(k_alpha, (G,))).astype(jnp.float32)

    w0 = (0.2 * jax.random.normal(k_w0, (D, D))).astype(jnp.float32)  # Linear(in,  out, bias=False)
    w1 = (0.2 * jax.random.normal(k_w1, (D, D))).astype(jnp.float32)  # Linear(out, out, bias=False)
    lin_weights = [w0, w1][:n_layers]

    x = jax.random.normal(k_x, (B, N, D), dtype=jnp.float32)

    x_out, prior = multiple_gcn(x, matrices, sigma_w, alpha, lin_weights)
    x_out = jax.block_until_ready(x_out)
    prior = jax.block_until_ready(prior)

    ref_x, ref_prior = _reference(x, matrices, sigma_w, alpha, lin_weights)

    assert x_out.shape == (B, N, D), x_out.shape
    assert prior.shape == (N, N), prior.shape
    assert jnp.allclose(prior, ref_prior, atol=1e-5, rtol=1e-4), \
        float(jnp.abs(prior - ref_prior).max())
    assert jnp.allclose(x_out, ref_x, atol=1e-4, rtol=1e-4), \
        float(jnp.abs(x_out - ref_x).max())

    print("KERNEL_OK")
</pallas_src>

<mosaic_0001>
module attributes {stable_mosaic.version = 11 : i64} {
  func.func @_sts_kernel(%arg0: i32, %arg1: memref<3x16x16xf32, #tpu.memory_space<vmem>>, %arg2: memref<3x1x16xf32, #tpu.memory_space<vmem>>, %arg3: memref<3x1x1xf32, #tpu.memory_space<vmem>>, %arg4: memref<16x16xf32, #tpu.memory_space<vmem>>) attributes {dimension_semantics = [#tpu.dimension_semantics<parallel>], iteration_bounds = array<i64: 1>, scalar_prefetch = 0 : i64, scratch_operands = 0 : i64, tpu.core_type = #tpu.core_type<tc>, window_params = [{transform_indices = @transform_0, window_bounds = array<i64: 3, 16, 16>}, {transform_indices = @transform_1, window_bounds = array<i64: 3, 1, 16>}, {pipeline_mode = #tpu.pipeline_mode<synchronous>, transform_indices = @transform_2, window_bounds = array<i64: 3, 1, 1>}, {transform_indices = @transform_3, window_bounds = array<i64: 16, 16>}]} {
    %c0 = arith.constant 0 : index
    %c0_0 = arith.constant 0 : index
    %c0_1 = arith.constant 0 : index
    %0 = vector.load %arg1[%c0, %c0_0, %c0_1] : memref<3x16x16xf32, #tpu.memory_space<vmem>>, vector<3x16x16xf32>
    %c0_2 = arith.constant 0 : index
    %c0_3 = arith.constant 0 : index
    %c0_4 = arith.constant 0 : index
    %1 = vector.load %arg2[%c0_2, %c0_3, %c0_4] : memref<3x1x16xf32, #tpu.memory_space<vmem>>, vector<3x1x16xf32>
    %cst = arith.constant -5.000000e+00 : f32
    %2 = vector.broadcast %cst : f32 to vector<3x1x16xf32>
    %3 = arith.mulf %2, %1 : vector<3x1x16xf32>
    %4 = math.exp %3 : vector<3x1x16xf32>
    %cst_5 = arith.constant 1.000000e+00 : f32
    %5 = vector.broadcast %cst_5 : f32 to vector<3x1x16xf32>
    %6 = arith.addf %5, %4 : vector<3x1x16xf32>
    %cst_6 = arith.constant 1.000000e+00 : f32
    %7 = vector.broadcast %cst_6 : f32 to vector<3x1x16xf32>
    %8 = arith.divf %7, %6 : vector<3x1x16xf32>
    %cst_7 = arith.constant 9.99999974E-6 : f32
    %9 = vector.broadcast %cst_7 : f32 to vector<3x1x16xf32>
    %10 = arith.addf %8, %9 : vector<3x1x16xf32>
    %cst_8 = arith.constant 1.09861231 : f32
    %11 = vector.broadcast %cst_8 : f32 to vector<3x1x16xf32>
    %12 = arith.mulf %10, %11 : vector<3x1x16xf32>
    %13 = math.exp %12 : vector<3x1x16xf32>
    %cst_9 = arith.constant 1.000000e+00 : f32
    %14 = vector.broadcast %cst_9 : f32 to vector<3x1x16xf32>
    %15 = arith.subf %13, %14 : vector<3x1x16xf32>
    %16 = arith.mulf %15, %15 : vector<3x1x16xf32>
    %cst_10 = arith.constant -5.000000e-01 : f32
    %17 = vector.broadcast %cst_10 : f32 to vector<3x1x16xf32>
    %18 = arith.divf %17, %16 : vector<3x1x16xf32>
    %cst_11 = arith.constant 2.50662827 : f32
    %19 = vector.broadcast %cst_11 : f32 to vector<3x1x16xf32>
    %20 = arith.mulf %19, %15 : vector<3x1x16xf32>
    %cst_12 = arith.constant 1.000000e+00 : f32
    %21 = vector.broadcast %cst_12 : f32 to vector<3x1x16xf32>
    %22 = arith.divf %21, %20 : vector<3x1x16xf32>
    %23 = vector.broadcast %18 : vector<3x1x16xf32> to vector<3x16x16xf32>
    %24 = arith.mulf %0, %23 : vector<3x16x16xf32>
    %25 = math.exp %24 : vector<3x16x16xf32>
    %26 = vector.broadcast %22 : vector<3x1x16xf32> to vector<3x16x16xf32>
    %27 = arith.mulf %25, %26 : vector<3x16x16xf32>
    %28 = tpu.iota {dimensions = array<i32: 0>} : vector<16x16xi32>
    %29 = tpu.iota {dimensions = array<i32: 1>} : vector<16x16xi32>
    %c16_i32 = arith.constant 16 : i32
    %30 = arith.muli %arg0, %c16_i32 : i32
    %31 = vector.broadcast %30 : i32 to vector<16x16xi32>
    %32 = arith.addi %29, %31 : vector<16x16xi32>
    %cst_13 = arith.constant 0.000000e+00 : f32
    %33 = vector.broadcast %cst_13 : f32 to vector<3x16x16xf32>
    %34 = arith.cmpf oeq, %0, %33 : vector<3x16x16xf32>
    %35 = arith.cmpi ne, %28, %32 : vector<16x16xi32>
    %36 = vector.shape_cast %35 : vector<16x16xi1> to vector<1x16x16xi1>
    %37 = vector.broadcast %36 : vector<1x16x16xi1> to vector<3x16x16xi1>
    %38 = arith.andi %34, %37 : vector<3x16x16xi1>
    %cst_14 = arith.constant 0.000000e+00 : f32
    %39 = vector.broadcast %cst_14 : f32 to vector<3x16x16xf32>
    %40 = arith.select %38, %39, %27 : vector<3x16x16xi1>, vector<3x16x16xf32>
    %cst_15 = arith.constant dense<0.000000e+00> : vector<3x16xf32>
    %41 = vector.multi_reduction <add>, %40, %cst_15 [1] : vector<3x16x16xf32> to vector<3x16xf32>
    %42 = vector.shape_cast %41 : vector<3x16xf32> to vector<3x1x16xf32>
    %cst_16 = arith.constant 9.99999993E-9 : f32
    %43 = vector.broadcast %cst_16 : f32 to vector<3x1x16xf32>
    %44 = arith.addf %42, %43 : vector<3x1x16xf32>
    %cst_17 = arith.constant 1.000000e+00 : f32
    %45 = vector.broadcast %cst_17 : f32 to vector<3x1x16xf32>
    %46 = arith.divf %45, %44 : vector<3x1x16xf32>
    %47 = vector.broadcast %46 : vector<3x1x16xf32> to vector<3x16x16xf32>
    %48 = arith.mulf %40, %47 : vector<3x16x16xf32>
    %c0_18 = arith.constant 0 : index
    %c0_19 = arith.constant 0 : index
    %c0_20 = arith.constant 0 : index
    %49 = vector.load %arg3[%c0_18, %c0_19, %c0_20] : memref<3x1x1xf32, #tpu.memory_space<vmem>>, vector<3x1x1xf32>
    %50 = vector.broadcast %49 : vector<3x1x1xf32> to vector<3x16x16xf32>
    %51 = arith.mulf %48, %50 : vector<3x16x16xf32>
    %cst_21 = arith.constant dense<0.000000e+00> : vector<16x16xf32>
    %52 = vector.multi_reduction <add>, %51, %cst_21 [0] : vector<3x16x16xf32> to vector<16x16xf32>
    %c0_22 = arith.constant 0 : index
    %c0_23 = arith.constant 0 : index
    %53 = vector.load %arg4[%c0_22, %c0_23] : memref<16x16xf32, #tpu.memory_space<vmem>>, vector<16x16xf32>
    tpu.vector_store %arg4[%c0_22, %c0_23], %52 {strides = array<i32>} : memref<16x16xf32, #tpu.memory_space<vmem>>, vector<16x16xf32>,
    return
  }
  func.func @transform_0(%arg0: i32) -> (i32, i32, i32) {
    %c0_i32 = arith.constant 0 : i32
    %c0_i32_0 = arith.constant 0 : i32
    %c0_i32_1 = arith.constant 0 : i32
    return %c0_i32, %c0_i32_0, %arg0 : i32, i32, i32
  }
  func.func @transform_1(%arg0: i32) -> (i32, i32, i32) {
    %c0_i32 = arith.constant 0 : i32
    %c0_i32_0 = arith.constant 0 : i32
    %c0_i32_1 = arith.constant 0 : i32
    return %c0_i32, %c0_i32_0, %arg0 : i32, i32, i32
  }
  func.func @transform_2(%arg0: i32) -> (i32, i32, i32) {
    %c0_i32 = arith.constant 0 : i32
    %c0_i32_0 = arith.constant 0 : i32
    %c0_i32_1 = arith.constant 0 : i32
    %c0_i32_2 = arith.constant 0 : i32
    return %c0_i32, %c0_i32_0, %c0_i32_1 : i32, i32, i32
  }
  func.func @transform_3(%arg0: i32) -> (i32, i32) {
    %c0_i32 = arith.constant 0 : i32
    %c0_i32_0 = arith.constant 0 : i32
    return %c0_i32, %arg0 : i32, i32
  }
}

</mosaic_0001>

<llo_original>
// kernel: tpu_custom_call.1
$region0: #{tpu_custom_call.1}
  #allocation0 [shape = 'u32[]', space=smem, size = 0x4, offset = 0x4, fixed_abs, tag = 'smem constant byte address 0x4 - core index']
  #allocation1 [shape = 'u32[144,128]{1,0:T(1,128)}', space=vmem, size = 0x12000, scoped, tag = 'internal scratch']
  %s0 = inlined_call_operand.hbm [shape: f32[3,16,16], index: 0, kind: input, shape index: {}]
  %s1 = inlined_call_operand.vmem [shape: f32[3,1,16], index: 1, kind: input, shape index: {}]
  %s2 = inlined_call_operand.vmem [shape: f32[3,1,1], index: 2, kind: input, shape index: {}]
  %s3 = inlined_call_operand.hbm [shape: f32[16,16], index: 3, kind: output, shape index: {}]
  %s4 = sld [smem:[#allocation0]]
  $region26: #{tpu_custom_call.1} parent=0
    _
  %s6 = ssub.s32 1, %s4
  %s7 = scalar_select 0, %s6, %s4
  $region1: #{tpu_custom_call.1} parent=0
    #allocation2 [shape = 'u8[24576]{0}', space=vmem, size = 0x6000, scoped, tag = 'input window, operand 0, single buffered']
    #allocation3 [shape = 's32[1]{0}', space=sflag, size = 0x4, scoped, tag = 'scoped memory for tpu_custom_call.1']
    #allocation4 [shape = 's32[1]{0}', space=sflag, size = 0x4, scoped, tag = 'scoped memory for tpu_custom_call.1']
    #allocation5 [shape = 'u8[8192]{0}', space=vmem, size = 0x2000, scoped, tag = 'output window, operand 0, single buffered']
    %8 = vsyncpa [#allocation3], 0
    %9 = vsyncpa [#allocation4], 0
    // Predicated region
    $region2: #{tpu_custom_call.1} parent=1 // pred_check
      _
    $region3: #{tpu_custom_call.1} parent=1 // pred_check_branch
      %11 = sbr.rel (0) target = $region5
    $region4: #{tpu_custom_call.1} parent=1 // pred_region
      %s13 = ssub.s32 768, 768
      %14 = vsyncadd [#allocation3], %s13
      %s15 = sshll.u32 [#allocation2], 4
      %s16 = int_to_ptr.vmem [resolvable:$true] %s15
      %21 = dma.hbm_to_vmem [thread:$0]  %s0, 768, %s16, [#allocation3], 128, 128, 8
    $region5: #{tpu_custom_call.1} parent=1 // pred_fallthru
      _
    // Predicated region
    $region6: #{tpu_custom_call.1} parent=1 // pred_check
      _
    $region7: #{tpu_custom_call.1} parent=1 // pred_check_branch
      %23 = sbr.rel (0) target = $region9
    $region8: #{tpu_custom_call.1} parent=1 // pred_region
      _
    $region9: #{tpu_custom_call.1} parent=1 // pred_fallthru
      _
    // Predicated region
    $region10: #{tpu_custom_call.1} parent=1 // pred_check
      _
    $region11: #{tpu_custom_call.1} parent=1 // pred_check_branch
      %25 = sbr.rel (0) target = $region13
    $region12: #{tpu_custom_call.1} parent=1 // pred_region
      _
    $region13: #{tpu_custom_call.1} parent=1 // pred_fallthru
      _
    // Predicated region
    $region14: #{tpu_custom_call.1} parent=1 // pred_check
      _
    $region15: #{tpu_custom_call.1} parent=1 // pred_check_branch
      %27 = sbr.rel (0) target = $region17
    $region16: #{tpu_custom_call.1} parent=1 // pred_region
      %28 = dma.done [#allocation3], 768
    $region17: #{tpu_custom_call.1} parent=1 // pred_fallthru
      _
    %v29 = vld [vmem:[#allocation2] sm:$0xff]
    %v30 = vld [vmem:[#allocation2 + $0x8] sm:$0xff]
    %v31 = vld [vmem:[#allocation2 + $0x10] sm:$0xff]
    %v32 = vld [vmem:[#allocation2 + $0x18] sm:$0xff]
    %v33 = vld [vmem:[#allocation2 + $0x20] sm:$0xff]
    %v34 = vld [vmem:[#allocation2 + $0x28] sm:$0xff]
    %v35 = vld [vmem:[%s1] sm:$0x1]
    %v36 = vld [vmem:[%s1 + $0x1] sm:$0x1]
    %v37 = vld [vmem:[%s1 + $0x2] sm:$0x1]
    %v38 = vmul.f32 %v35, -5.0
    %v39 = vmul.f32 %v36, -5.0
    %v40 = vmul.f32 %v37, -5.0
    %v41 = vmul.f32 %v38, 1.442695
    %v42 = vpow.pop %v41
    %v43 = vmul.f32 %v39, 1.442695
    %v44 = vpow.pop %v43
    %v45 = vmul.f32 %v40, 1.442695
    %v46 = vpow.pop %v45
    %v47 = vadd.f32 %v42, 1.0
    %v48 = vadd.f32 %v44, 1.0
    %v49 = vadd.f32 %v46, 1.0
    %v50 = vrcp.pop %v47
    %v51 = vmul.f32 1.0, %v50
    %v52 = vrcp.pop %v48
    %v53 = vmul.f32 1.0, %v52
    %v54 = vrcp.pop %v49
    %v55 = vmul.f32 1.0, %v54
    %v56 = vadd.f32 %v51, 1e-05
    %v57 = vadd.f32 %v53, 1e-05
    %v58 = vadd.f32 %v55, 1e-05
    %v59 = vmul.f32 %v56, 1.0986123
    %v60 = vmul.f32 %v57, 1.0986123
    %v61 = vmul.f32 %v58, 1.0986123
    %v62 = vmul.f32 %v59, 1.442695
    %v63 = vpow.pop %v62
    %v64 = vmul.f32 %v60, 1.442695
    %v65 = vpow.pop %v64
    %v66 = vmul.f32 %v61, 1.442695
    %v67 = vpow.pop %v66
    %v68 = vsub.f32 %v63, 1.0
    %v69 = vsub.f32 %v65, 1.0
    %v70 = vsub.f32 %v67, 1.0
    %v71 = vmul.f32 %v68, %v68
    %v72 = vmul.f32 %v69, %v69
    %v73 = vmul.f32 %v70, %v70
    %v74 = vrcp.pop %v71
    %v75 = vmul.f32 -0.5, %v74
    %v76 = vrcp.pop %v72
    %v77 = vmul.f32 -0.5, %v76
    %v78 = vrcp.pop %v73
    %v79 = vmul.f32 -0.5, %v78
    %v80 = vmul.f32 %v68, 2.5066283
    %v81 = vmul.f32 %v69, 2.5066283
    %v82 = vmul.f32 %v70, 2.5066283
    %v83 = vrcp.pop %v80
    %v84 = vmul.f32 1.0, %v83
    %v85 = vrcp.pop %v81
    %v86 = vmul.f32 1.0, %v85
    %v87 = vrcp.pop %v82
    %v88 = vmul.f32 1.0, %v87
    %v92 = vlaneseq
    %v93 = vshrl.u32 %v92, 7
    %v94 = vsub.s32 0, %v93
    %v95 = vrot.slane %v75, %v94
    %v96 = vlaneseq
    %v97 = vshrl.u32 %v96, 7
    %v98 = vsub.s32 0, %v97
    %v99 = vrot.slane %v77, %v98
    %v100 = vlaneseq
    %v101 = vshrl.u32 %v100, 7
    %v102 = vsub.s32 0, %v101
    %v103 = vrot.slane %v79, %v102
    %v107 = vmul.f32 %v29, %v95
    %v108 = vmul.f32 %v30, %v95
    %v109 = vmul.f32 %v31, %v99
    %v110 = vmul.f32 %v32, %v99
    %v111 = vmul.f32 %v33, %v103
    %v112 = vmul.f32 %v34, %v103
    %v113 = vmul.f32 %v107, 1.442695
    %v114 = vpow.pop %v113
    %v115 = vmul.f32 %v108, 1.442695
    %v116 = vpow.pop %v115
    %v117 = vmul.f32 %v109, 1.442695
    %v118 = vpow.pop %v117
    %v119 = vmul.f32 %v110, 1.442695
    %v120 = vpow.pop %v119
    %v121 = vmul.f32 %v111, 1.442695
    %v122 = vpow.pop %v121
    %v123 = vmul.f32 %v112, 1.442695
    %v124 = vpow.pop %v123
    %v128 = vlaneseq
    %v129 = vshrl.u32 %v128, 7
    %v130 = vsub.s32 0, %v129
    %v131 = vrot.slane %v84, %v130
    %v132 = vlaneseq
    %v133 = vshrl.u32 %v132, 7
    %v134 = vsub.s32 0, %v133
    %v135 = vrot.slane %v86, %v134
    %v136 = vlaneseq
    %v137 = vshrl.u32 %v136, 7
    %v138 = vsub.s32 0, %v137
    %v139 = vrot.slane %v88, %v138
    %v143 = vmul.f32 %v114, %v131
    %v144 = vmul.f32 %v116, %v131
    %v145 = vmul.f32 %v118, %v135
    %v146 = vmul.f32 %v120, %v135
    %v147 = vmul.f32 %v122, %v139
    %v148 = vmul.f32 %v124, %v139
    %v149 = vlaneseq
    %v150 = vshrl.u32 %v149, 7
    %v151 = vadd.s32 %v150, 8
    %v152 = vlaneseq
    %v153 = vand.u32 %v152, 127
    %s154 = smul.u32 0, 16
    %v155 = vstv %s154
    %v156 = vadd.s32 %v153, %v155
    %vm157 = vcmp.eq.f32.partialorder %v29, 0.0
    %vm158 = vcmp.eq.f32.partialorder %v30, 0.0
    %vm159 = vcmp.eq.f32.partialorder %v31, 0.0
    %vm160 = vcmp.eq.f32.partialorder %v32, 0.0
    %vm161 = vcmp.eq.f32.partialorder %v33, 0.0
    %vm162 = vcmp.eq.f32.partialorder %v34, 0.0
    %vm163 = vcmp.ne.s32.totalorder %v150, %v156
    %vm164 = vcmp.ne.s32.totalorder %v151, %v156
    %v165 = vsel %vm163, 1, 0
    %v166 = vsel %vm164, 1, 0
    %vm167 = vcmp.eq.s32.totalorder %v165, 1
    %vm168 = vcmp.eq.s32.totalorder %v166, 1
    %vm169 = vmand %vm157, %vm167
    %vm170 = vmand %vm158, %vm168
    %vm171 = vmand %vm159, %vm167
    %vm172 = vmand %vm160, %vm168
    %vm173 = vmand %vm161, %vm167
    %vm174 = vmand %vm162, %vm168
    %v175 = vsel %vm169, 0.0, %v143
    %v176 = vsel %vm170, 0.0, %v144
    %v177 = vsel %vm171, 0.0, %v145
    %v178 = vsel %vm172, 0.0, %v146
    %v179 = vsel %vm173, 0.0, %v147
    %v180 = vsel %vm174, 0.0, %v148
    %vm181 = vcmask 130048
    %v182 = vsel %vm181, %v175, 0.0
    %v183 = vsel %vm181, %v176, 0.0
    %v184 = vadd.f32 %v182, %v183
    %v185 = vrot.slane %v184, 4
    %v186 = vadd.f32 %v184, %v185
    %v187 = vrot.slane %v186, 2
    %v188 = vadd.f32 %v186, %v187
    %v189 = vrot.slane %v188, 1
    %v190 = vadd.f32 %v188, %v189
    %v191 = vsel %vm181, %v177, 0.0
    %v192 = vsel %vm181, %v178, 0.0
    %v193 = vadd.f32 %v191, %v192
    %v194 = vrot.slane %v193, 4
    %v195 = vadd.f32 %v193, %v194
    %v196 = vrot.slane %v195, 2
    %v197 = vadd.f32 %v195, %v196
    %v198 = vrot.slane %v197, 1
    %v199 = vadd.f32 %v197, %v198
    %v200 = vsel %vm181, %v179, 0.0
    %v201 = vsel %vm181, %v180, 0.0
    %v202 = vadd.f32 %v200, %v201
    %v203 = vrot.slane %v202, 4
    %v204 = vadd.f32 %v202, %v203
    %v205 = vrot.slane %v204, 2
    %v206 = vadd.f32 %v204, %v205
    %v207 = vrot.slane %v206, 1
    %v208 = vadd.f32 %v206, %v207
    %v209 = vadd.f32 %v190, 1e-08
    %v210 = vadd.f32 %v199, 1e-08
    %v211 = vadd.f32 %v208, 1e-08
    %v212 = vrcp.pop %v209
    %v213 = vmul.f32 1.0, %v212
    %v214 = vrcp.pop %v210
    %v215 = vmul.f32 1.0, %v214
    %v216 = vrcp.pop %v211
    %v217 = vmul.f32 1.0, %v216
    %v218 = vmul.f32 %v175, %v213
    %v219 = vmul.f32 %v176, %v213
    %v220 = vmul.f32 %v177, %v215
    %v221 = vmul.f32 %v178, %v215
    %v222 = vmul.f32 %v179, %v217
    %v223 = vmul.f32 %v180, %v217
    %v224 = vld [vmem:[%s2] sm:$0x1]
    %v225 = vld [vmem:[%s2 + $0x1] sm:$0x1]
    %v226 = vld [vmem:[%s2 + $0x2] sm:$0x1]
    %v230 = vlaneseq
    %v231 = vshrl.u32 %v230, 7
    %v232 = vsub.s32 0, %v231
    %v233 = vrot.slane %v224, %v232
    %v234 = vlaneseq
    %v235 = vshrl.u32 %v234, 7
    %v236 = vsub.s32 0, %v235
    %v237 = vrot.slane %v225, %v236
    %v238 = vlaneseq
    %v239 = vshrl.u32 %v238, 7
    %v240 = vsub.s32 0, %v239
    %v241 = vrot.slane %v226, %v240
    %242 = vset.pattern.permute.xlu0 0
    %243 = vperm.xlu0 %242, %v233
    %v244 = vpop.permute.xlu0 %243
    %246 = vset.pattern.permute.xlu0 0
    %247 = vperm.xlu0 %246, %v237
    %v248 = vpop.permute.xlu0 %247
    %250 = vset.pattern.permute.xlu0 0
    %251 = vperm.xlu0 %250, %v241
    %v252 = vpop.permute.xlu0 %251
    %v254 = vmul.f32 %v218, %v244
    %v255 = vmul.f32 %v219, %v244
    %v256 = vmul.f32 %v220, %v248
    %v257 = vmul.f32 %v221, %v248
    %v258 = vmul.f32 %v222, %v252
    %v259 = vmul.f32 %v223, %v252
    %v260 = vsel %vm181, %v254, 0.0
    %v261 = vsel %vm181, %v256, 0.0
    %v262 = vadd.f32 %v260, %v261
    %v263 = vsel %vm181, %v258, 0.0
    %v264 = vadd.f32 %v262, %v263
    %v265 = vsel %vm181, %v255, 0.0
    %v266 = vsel %vm181, %v257, 0.0
    %v267 = vadd.f32 %v265, %v266
    %v268 = vsel %vm181, %v259, 0.0
    %v269 = vadd.f32 %v267, %v268
    %270 = vst.msk [vmem:[#allocation5] sm:$0xff] %vm181, %v264
    %271 = vst.msk [vmem:[#allocation5 + $0x8] sm:$0xff] %vm181, %v269
    // Predicated region
    $region18: #{tpu_custom_call.1} parent=1 // pred_check
      _
    $region19: #{tpu_custom_call.1} parent=1 // pred_check_branch
      %273 = sbr.rel (0) target = $region21
    $region20: #{tpu_custom_call.1} parent=1 // pred_region
      %s275 = ssub.s32 256, 256
      %276 = vsyncadd [#allocation4], %s275
      %s277 = sshll.u32 [#allocation5], 4
      %s278 = int_to_ptr.vmem [resolvable:$true] %s277
      %283 = dma.vmem_to_hbm [thread:$0]  %s278, 256, %s3, [#allocation4], 128, 128, 8
    $region21: #{tpu_custom_call.1} parent=1 // pred_fallthru
      _
    // Predicated region
    $region22: #{tpu_custom_call.1} parent=1 // pred_check
      _
    $region23: #{tpu_custom_call.1} parent=1 // pred_check_branch
      %285 = sbr.rel (0) target = $region25
    $region24: #{tpu_custom_call.1} parent=1 // pred_region
      %286 = dma.done [#allocation4], 256
    $region25: #{tpu_custom_call.1} parent=1 // pred_fallthru
      _
    %287 = vsyncpa [#allocation3], 1
    %288 = vsyncpa [#allocation4], 1

</llo_original>
